<compile_context>
chip_gen: v6e
topology: v6e:2x2x1
jax: 0.10.0
libtpu: 0.0.40
codegen_flags: <defaults>
</compile_context>

<pallas_src>
import jax
import jax.numpy as jnp
from jax.experimental import pallas as pl
from jax.experimental.pallas import tpu as pltpu


def channel_attention(x, w1, w2, *, max_tile_hw=None,
                      vmem_budget_bytes=16 * 1024 * 1024):
    """x: (N, C, H, W) (NCHW, matching PyTorch).

    w1: (C//16, C)  -- squeezed weight of Conv2d(C, C//16, 1, bias=False)
    w2: (C, C//16)  -- squeezed weight of Conv2d(C//16, C, 1, bias=False)
    Returns (N, C, 1, 1) like the PyTorch module.
    """
    N, C, H, W = x.shape
    HW = H * W
    hidden = w1.shape[0]

    # Free view: NCHW is contiguous over (H, W), so this is just a reshape.
    x3 = x.reshape(N, C, HW)

    # ---- tile size: largest lane tile whose working set fits the budget ----
    # live VMEM ~ 4 * (C * t * 4) bytes  (2x double-buffered x + 2 accumulators)
    t_cap = max(128, vmem_budget_bytes // (16 * C))
    if max_tile_hw is not None:
        t_cap = min(t_cap, max(1, int(max_tile_hw)))
    if HW <= t_cap:
        t, num_hw, needs_mask = HW, 1, False          # single full-width tile
    else:
        t = max(128, (t_cap // 128) * 128)            # lane-aligned tile
        num_hw = pl.cdiv(HW, t)
        needs_mask = (HW % t) != 0                    # only last tile partial

    inv_hw = 1.0 / float(HW)

    def kernel(x_ref, w1_ref, w2_ref, o_ref, sum_acc, max_acc):
        # x_ref:  (1, C, t)    current HW tile of one batch element
        # w1_ref: (hidden, C)  VMEM-resident across the HW grid
        # w2_ref: (C, hidden)  VMEM-resident across the HW grid
        # o_ref:  (1, C, 1)
        k = pl.program_id(1)
        last = pl.num_programs(1) - 1

        @pl.when(k == 0)
        def _():
            sum_acc[...] = jnp.zeros_like(sum_acc)
            max_acc[...] = jnp.full_like(max_acc, -jnp.inf)

        xt = x_ref[0].astype(jnp.float32)             # (C, t)

        if needs_mask:
            @pl.when(k < last)                        # steady state: pure VPU
            def _():
                sum_acc[...] += xt
                max_acc[...] = jnp.maximum(max_acc[...], xt)

            @pl.when(k == last)                       # only partial tile masks
            def _():
                col = jax.lax.broadcasted_iota(jnp.int32, (C, t), 1)
                valid = (k * t + col) < HW
                sum_acc[...] += jnp.where(valid, xt, 0.0)
                max_acc[...] = jnp.maximum(max_acc[...],
                                           jnp.where(valid, xt, -jnp.inf))
        else:
            sum_acc[...] += xt
            max_acc[...] = jnp.maximum(max_acc[...], xt)

        @pl.when(k == last)
        def _():
            # One cross-lane reduce; stack both pooled vectors as columns.
            avg_p = jnp.sum(sum_acc[...], axis=1, keepdims=True) * inv_hw
            max_p = jnp.max(max_acc[...], axis=1, keepdims=True)
            pooled = jnp.concatenate([avg_p, max_p], axis=1)            # (C, 2)

            w1m = w1_ref[...].astype(jnp.float32)                       # (h, C)
            w2m = w2_ref[...].astype(jnp.float32)                       # (C, h)
            h = jnp.maximum(
                jnp.dot(w1m, pooled, preferred_element_type=jnp.float32), 0.0)
            out2 = jnp.dot(w2m, h, preferred_element_type=jnp.float32)  # (C, 2)
            out = jnp.sum(out2, axis=1, keepdims=True)                  # (C, 1)
            o_ref[...] = jax.nn.sigmoid(out)[None].astype(o_ref.dtype)

    cost = pl.CostEstimate(
        flops=2 * N * HW * C + 8 * N * C * hidden,
        transcendentals=N * C,
        bytes_accessed=(N * C * HW * x.dtype.itemsize
                        + 2 * C * hidden * 4
                        + N * C * x.dtype.itemsize),
    )

    out = pl.pallas_call(
        kernel,
        out_shape=jax.ShapeDtypeStruct((N, C, 1), x.dtype),
        grid_spec=pltpu.PrefetchScalarGridSpec(
            num_scalar_prefetch=0,
            grid=(N, num_hw),
            in_specs=[
                pl.BlockSpec((1, C, t), lambda n, k: (n, 0, k)),
                pl.BlockSpec((hidden, C), lambda n, k: (0, 0)),
                pl.BlockSpec((C, hidden), lambda n, k: (0, 0)),
            ],
            out_specs=pl.BlockSpec((1, C, 1), lambda n, k: (n, 0, 0)),
            scratch_shapes=[
                pltpu.VMEM((C, t), jnp.float32),  # running sum
                pltpu.VMEM((C, t), jnp.float32),  # running max
            ],
        ),
        compiler_params=pltpu.CompilerParams(
            dimension_semantics=("parallel", "arbitrary"),
            vmem_limit_bytes=32 * 1024 * 1024,
        ),
        cost_estimate=cost,
    )(x3, w1, w2)

    return out.reshape(N, C, 1, 1)


def reference(x, w1, w2):
    """Pure-JAX reference matching the PyTorch module."""
    avg_p = jnp.mean(x, axis=(2, 3))   # (N, C)
    max_p = jnp.max(x, axis=(2, 3))    # (N, C)

    def fc(p):
        h = jnp.maximum(p @ w1.T, 0.0)
        return h @ w2.T

    return jax.nn.sigmoid(fc(avg_p) + fc(max_p)).reshape(
        x.shape[0], x.shape[1], 1, 1)


if __name__ == "__main__":
    key = jax.random.PRNGKey(0)
    k_x, k_w1, k_w2, k_x2, k_x3 = jax.random.split(key, 5)

    N, C, H, W = 2, 32, 16, 16      # C >= 16 since the module hardcodes C // 16
    hidden = C // 16

    x = jax.random.normal(k_x, (N, C, H, W), dtype=jnp.float32)
    w1 = jax.random.normal(k_w1, (hidden, C), dtype=jnp.float32) * 0.1
    w2 = jax.random.normal(k_w2, (C, hidden), dtype=jnp.float32) * 0.1

    # 1) Multi-tile HW path (HW=256, tile=128 -> 2 accumulation steps, no mask).
    out = channel_attention(x, w1, w2, max_tile_hw=128)
    jax.block_until_ready(out)
    ref = reference(x, w1, w2)
    assert out.shape == (N, C, 1, 1)
    assert jnp.allclose(out, ref, atol=1e-5, rtol=1e-5), "mismatch (divisible HW)"

    # 2) Ragged HW path (HW=169, tile=128 -> masked partial last tile, no pad).
    x2 = jax.random.normal(k_x2, (N, C, 13, 13), dtype=jnp.float32)
    out2 = channel_attention(x2, w1, w2, max_tile_hw=128)
    jax.block_until_ready(out2)
    ref2 = reference(x2, w1, w2)
    assert jnp.allclose(out2, ref2, atol=1e-5, rtol=1e-5), "mismatch (ragged HW)"

    # 3) Default sizing: whole HW fits in one lane-resident tile.
    x3 = jax.random.normal(k_x3, (N, C, 9, 9), dtype=jnp.float32)
    out3 = channel_attention(x3, w1, w2)
    jax.block_until_ready(out3)
    ref3 = reference(x3, w1, w2)
    assert jnp.allclose(out3, ref3, atol=1e-5, rtol=1e-5), "mismatch (single tile)"

    print("KERNEL_OK")
</pallas_src>

<mosaic_0001>
module attributes {stable_mosaic.version = 11 : i64} {
  func.func @kernel(%arg0: i32, %arg1: i32, %arg2: memref<1x32x128xf32, #tpu.memory_space<vmem>>, %arg3: memref<2x32xf32, #tpu.memory_space<vmem>>, %arg4: memref<32x2xf32, #tpu.memory_space<vmem>>, %arg5: memref<1x32x1xf32, #tpu.memory_space<vmem>>, %arg6: memref<32x128xf32, #tpu.memory_space<vmem>>, %arg7: memref<32x128xf32, #tpu.memory_space<vmem>>) attributes {dimension_semantics = [#tpu.dimension_semantics<parallel>, #tpu.dimension_semantics<arbitrary>], iteration_bounds = array<i64: 2, 2>, scalar_prefetch = 0 : i64, scratch_operands = 2 : i64, tpu.core_type = #tpu.core_type<tc>, window_params = [{transform_indices = @transform_0, window_bounds = array<i64: 1, 32, 128>}, {pipeline_mode = #tpu.pipeline_mode<synchronous>, transform_indices = @transform_1, window_bounds = array<i64: 2, 32>}, {pipeline_mode = #tpu.pipeline_mode<synchronous>, transform_indices = @transform_2, window_bounds = array<i64: 32, 2>}, {transform_indices = @transform_3, window_bounds = array<i64: 1, 32, 1>}]} {
    %c0_i32 = arith.constant 0 : i32
    %0 = arith.cmpi eq, %arg1, %c0_i32 : i32
    %1 = arith.extui %0 : i1 to i32
    %c0_i32_0 = arith.constant 0 : i32
    %2 = arith.cmpi ne, %1, %c0_i32_0 : i32
    scf.if %2 {
      %cst = arith.constant 0.000000e+00 : f32
      %14 = vector.broadcast %cst : f32 to vector<32x128xf32>
      %c0_12 = arith.constant 0 : index
      %c0_13 = arith.constant 0 : index
      %15 = vector.load %arg6[%c0_12, %c0_13] : memref<32x128xf32, #tpu.memory_space<vmem>>, vector<32x128xf32>
      tpu.vector_store %arg6[%c0_12, %c0_13], %14 {strides = array<i32>} : memref<32x128xf32, #tpu.memory_space<vmem>>, vector<32x128xf32>,
      %cst_14 = arith.constant 0xFF800000 : f32
      %16 = vector.broadcast %cst_14 : f32 to vector<32x128xf32>
      %c0_15 = arith.constant 0 : index
      %c0_16 = arith.constant 0 : index
      %17 = vector.load %arg7[%c0_15, %c0_16] : memref<32x128xf32, #tpu.memory_space<vmem>>, vector<32x128xf32>
      tpu.vector_store %arg7[%c0_15, %c0_16], %16 {strides = array<i32>} : memref<32x128xf32, #tpu.memory_space<vmem>>, vector<32x128xf32>,
    } else {
    }
    %c0 = arith.constant 0 : index
    %c0_1 = arith.constant 0 : index
    %c0_2 = arith.constant 0 : index
    %3 = vector.load %arg2[%c0, %c0_1, %c0_2] : memref<1x32x128xf32, #tpu.memory_space<vmem>>, vector<1x32x128xf32>
    %4 = vector.shape_cast %3 : vector<1x32x128xf32> to vector<32x128xf32>
    %c0_3 = arith.constant 0 : index
    %c0_4 = arith.constant 0 : index
    %5 = vector.load %arg6[%c0_3, %c0_4] : memref<32x128xf32, #tpu.memory_space<vmem>>, vector<32x128xf32>
    %6 = arith.addf %5, %4 : vector<32x128xf32>
    %c0_5 = arith.constant 0 : index
    %c0_6 = arith.constant 0 : index
    %7 = vector.load %arg6[%c0_5, %c0_6] : memref<32x128xf32, #tpu.memory_space<vmem>>, vector<32x128xf32>
    tpu.vector_store %arg6[%c0_5, %c0_6], %6 {strides = array<i32>} : memref<32x128xf32, #tpu.memory_space<vmem>>, vector<32x128xf32>,
    %c0_7 = arith.constant 0 : index
    %c0_8 = arith.constant 0 : index
    %8 = vector.load %arg7[%c0_7, %c0_8] : memref<32x128xf32, #tpu.memory_space<vmem>>, vector<32x128xf32>
    %9 = arith.maximumf %8, %4 : vector<32x128xf32>
    %c0_9 = arith.constant 0 : index
    %c0_10 = arith.constant 0 : index
    %10 = vector.load %arg7[%c0_9, %c0_10] : memref<32x128xf32, #tpu.memory_space<vmem>>, vector<32x128xf32>
    tpu.vector_store %arg7[%c0_9, %c0_10], %9 {strides = array<i32>} : memref<32x128xf32, #tpu.memory_space<vmem>>, vector<32x128xf32>,
    %c1_i32 = arith.constant 1 : i32
    %11 = arith.cmpi eq, %arg1, %c1_i32 : i32
    %12 = arith.extui %11 : i1 to i32
    %c0_i32_11 = arith.constant 0 : i32
    %13 = arith.cmpi ne, %12, %c0_i32_11 : i32
    scf.if %13 {
      %c0_12 = arith.constant 0 : index
      %c0_13 = arith.constant 0 : index
      %14 = vector.load %arg6[%c0_12, %c0_13] : memref<32x128xf32, #tpu.memory_space<vmem>>, vector<32x128xf32>
      %cst = arith.constant dense<0.000000e+00> : vector<32xf32>
      %15 = vector.multi_reduction <add>, %14, %cst [1] : vector<32x128xf32> to vector<32xf32>
      %16 = vector.shape_cast %15 : vector<32xf32> to vector<32x1xf32>
      %cst_14 = arith.constant 3.906250e-03 : f32
      %17 = vector.broadcast %cst_14 : f32 to vector<32x1xf32>
      %18 = arith.mulf %16, %17 : vector<32x1xf32>
      %c0_15 = arith.constant 0 : index
      %c0_16 = arith.constant 0 : index
      %19 = vector.load %arg7[%c0_15, %c0_16] : memref<32x128xf32, #tpu.memory_space<vmem>>, vector<32x128xf32>
      %cst_17 = arith.constant dense<0xFF800000> : vector<32xf32>
      %20 = vector.multi_reduction <maximumf>, %19, %cst_17 [1] : vector<32x128xf32> to vector<32xf32>
      %21 = vector.shape_cast %20 : vector<32xf32> to vector<32x1xf32>
      %22 = tpu.concatenate %18, %21 in 1 : vector<32x1xf32>, vector<32x1xf32> -> vector<32x2xf32>
      %c0_18 = arith.constant 0 : index
      %c0_19 = arith.constant 0 : index
      %23 = vector.load %arg3[%c0_18, %c0_19] : memref<2x32xf32, #tpu.memory_space<vmem>>, vector<2x32xf32>
      %c0_20 = arith.constant 0 : index
      %c0_21 = arith.constant 0 : index
      %24 = vector.load %arg4[%c0_20, %c0_21] : memref<32x2xf32, #tpu.memory_space<vmem>>, vector<32x2xf32>
      %cst_22 = arith.constant dense<0.000000e+00> : vector<2x2xf32>
      %25 = tpu.matmul %23, %22, %cst_22 {dimension_numbers = #tpu.dot_dimension_numbers<[1], [0], [0], [1], [0, 0, 1, 1], [], []>} : vector<2x32xf32>, vector<32x2xf32>, vector<2x2xf32> -> vector<2x2xf32>
      %cst_23 = arith.constant 0.000000e+00 : f32
      %26 = vector.broadcast %cst_23 : f32 to vector<2x2xf32>
      %27 = arith.maximumf %25, %26 : vector<2x2xf32>
      %cst_24 = arith.constant dense<0.000000e+00> : vector<32x2xf32>
      %28 = tpu.matmul %24, %27, %cst_24 {dimension_numbers = #tpu.dot_dimension_numbers<[1], [0], [0], [1], [0, 0, 1, 1], [], []>} : vector<32x2xf32>, vector<2x2xf32>, vector<32x2xf32> -> vector<32x2xf32>
      %cst_25 = arith.constant dense<0.000000e+00> : vector<32xf32>
      %29 = vector.multi_reduction <add>, %28, %cst_25 [1] : vector<32x2xf32> to vector<32xf32>
      %30 = vector.shape_cast %29 : vector<32xf32> to vector<32x1xf32>
      %31 = arith.negf %30 : vector<32x1xf32>
      %32 = math.exp %31 : vector<32x1xf32>
      %cst_26 = arith.constant 1.000000e+00 : f32
      %33 = vector.broadcast %cst_26 : f32 to vector<32x1xf32>
      %34 = arith.addf %33, %32 : vector<32x1xf32>
      %35 = arith.divf %33, %34 : vector<32x1xf32>
      %36 = vector.shape_cast %35 : vector<32x1xf32> to vector<1x32x1xf32>
      %c0_27 = arith.constant 0 : index
      %c0_28 = arith.constant 0 : index
      %c0_29 = arith.constant 0 : index
      %37 = vector.load %arg5[%c0_27, %c0_28, %c0_29] : memref<1x32x1xf32, #tpu.memory_space<vmem>>, vector<1x32x1xf32>
      tpu.vector_store %arg5[%c0_27, %c0_28, %c0_29], %36 {strides = array<i32>} : memref<1x32x1xf32, #tpu.memory_space<vmem>>, vector<1x32x1xf32>,
    } else {
    }
    return
  }
  func.func @transform_0(%arg0: i32, %arg1: i32) -> (i32, i32, i32) {
    %c0_i32 = arith.constant 0 : i32
    %c0_i32_0 = arith.constant 0 : i32
    return %arg0, %c0_i32, %arg1 : i32, i32, i32
  }
  func.func @transform_1(%arg0: i32, %arg1: i32) -> (i32, i32) {
    %c0_i32 = arith.constant 0 : i32
    %c0_i32_0 = arith.constant 0 : i32
    %c0_i32_1 = arith.constant 0 : i32
    return %c0_i32, %c0_i32_0 : i32, i32
  }
  func.func @transform_2(%arg0: i32, %arg1: i32) -> (i32, i32) {
    %c0_i32 = arith.constant 0 : i32
    %c0_i32_0 = arith.constant 0 : i32
    %c0_i32_1 = arith.constant 0 : i32
    return %c0_i32, %c0_i32_0 : i32, i32
  }
  func.func @transform_3(%arg0: i32, %arg1: i32) -> (i32, i32, i32) {
    %c0_i32 = arith.constant 0 : i32
    %c0_i32_0 = arith.constant 0 : i32
    %c0_i32_1 = arith.constant 0 : i32
    return %arg0, %c0_i32, %c0_i32_0 : i32, i32, i32
  }
}

</mosaic_0001>

<llo_original>
// kernel: tpu_custom_call.1
$region0: #{tpu_custom_call.1}
  #allocation0 [shape = 'u32[]', space=smem, size = 0x4, offset = 0x4, fixed_abs, tag = 'smem constant byte address 0x4 - core index']
  #allocation1 [shape = 'u32[144,128]{1,0:T(1,128)}', space=vmem, size = 0x12000, scoped, tag = 'internal scratch']
  #allocation2 [shape = 'f32[32,128]{1,0:T(8,128)}', space=vmem, size = 0x4000, scoped, tag = 'scratch operand']
  #allocation3 [shape = 'f32[32,128]{1,0:T(8,128)}', space=vmem, size = 0x4000, scoped, tag = 'scratch operand']
  %s0 = inlined_call_operand.hbm [shape: f32[2,32,256], index: 0, kind: input, shape index: {}]
  %s1 = inlined_call_operand.vmem [shape: f32[2,32], index: 1, kind: input, shape index: {}]
  %s2 = inlined_call_operand.vmem [shape: f32[32,2], index: 2, kind: input, shape index: {}]
  %s3 = inlined_call_operand.vmem [shape: f32[2,32,1], index: 3, kind: output, shape index: {}]
  %s4 = sld [smem:[#allocation0]]
  $region57: #{tpu_custom_call.1} parent=0
    _
  %s6 = ssub.s32 1, %s4
  %s7 = scalar_select 0, %s6, %s4
  $region1: #{tpu_custom_call.1} parent=0
    #allocation4 [shape = 'u8[32768]{0}', space=vmem, size = 0x8000, scoped, tag = 'input window, operand 0']
    #allocation5 [shape = 's32[2]{0}', space=sflag, size = 0x8, scoped, tag = 'scoped memory for tpu_custom_call.1']
    %8 = vsyncpa [#allocation5], 0
    %s9 = scalar_lea.sflag [#allocation5], 1
    %10 = vsyncpa %s9, 0
    loop: start=0, step=1, limit=6
    $region2: #{tpu_custom_call.1} parent=1 // loop_pre_header
      _
    $region3: #{tpu_custom_call.1} parent=1 // loop_header
      %s12 = sphi 0, %s16
      %p13 = scmp.ge.s32.totalorder %s12, 6
      %s19 = sphi 0, %s31
      %s20 = sphi 0, %s27
      %s21 = sphi 0, %s19
      %s22 = sphi 0, %s20
      %s23 = sphi 0, %s21
      %s24 = sphi 0, %s22
      %s36 = sphi 0, %s38
      %s39 = sphi 0, %s36
      %s40 = sphi 0, %s39
      %s56 = sphi 0, %s40
      %s60 = sphi 0, %s60
      %s62 = sphi 0, %s60
      %s63 = sphi 0, %s62
      %s77 = sphi 0, %s63
      %s81 = sphi 0, %s81
      %s83 = sphi 0, %s81
      %s84 = sphi 0, %s83
      %s98 = sphi 0, %s84
      %s104 = sphi 0, %s106
      %s107 = sphi 0, %s104
      %s108 = sphi 0, %s107
      %s124 = sphi 0, %s108
    $region4: #{tpu_custom_call.1} parent=1 // loop_header_branch
      %15 = sbr.rel (%p13) target = $region8
    $region5: #{tpu_custom_call.1} parent=1 // loop_body
      %s17 = ssub.s32 %s12, 1
      %s18 = ssub.s32 %s12, 2
      %s25 = sadd.s32 1, %s20
      %p26 = scmp.ge.s32.totalorder %s25, 2
      %s27 = scalar_select %p26, 0, %s25
      %s28 = sadd.s32 1, %s19
      %s29 = scalar_select %p26, %s28, %s19
      %p30 = scmp.ge.s32.totalorder %s29, 2
      %s31 = scalar_select %p30, 0, %s29
      %s32 = ssub.s32 %s19, %s31
      %s33 = ssub.s32 %s20, %s27
      %s34 = sor.u32 %s32, %s33
      %p35 = scmp.eq.s32.totalorder %s34, 0
      %s37 = sadd.s32 %s36, 1
      %s38 = scalar_select %p35, %s36, %s37
      %p41 = pneg %p35
      %p42 = scmp.eq.s32.totalorder %s12, 3
      %p43 = por %p41, %p42
      %p44 = scmp.ne.s32.totalorder %s36, %s39
      %p45 = scmp.eq.s32.totalorder %s12, 0
      %p46 = por %p44, %p45
      %p47 = scmp.ne.s32.totalorder %s36, %s39
      %p48 = scmp.eq.s32.totalorder %s17, 3
      %p49 = por %p47, %p48
      %p50 = scmp.ne.s32.totalorder %s39, %s40
      %p51 = scmp.eq.s32.totalorder %s17, 0
      %p52 = por %p50, %p51
      %p53 = scmp.ne.s32.totalorder %s39, %s40
      %p54 = scmp.eq.s32.totalorder %s18, 3
      %p55 = por %p53, %p54
      %p57 = scmp.ne.s32.totalorder %s40, %s56
      %p58 = scmp.eq.s32.totalorder %s18, 0
      %p59 = por %p57, %p58
      %s61 = sadd.s32 %s60, 1
      %p64 = scmp.eq.s32.totalorder %s12, 3
      %p65 = scmp.ne.s32.totalorder %s60, %s62
      %p66 = scmp.eq.s32.totalorder %s12, 0
      %p67 = por %p65, %p66
      %p68 = scmp.ne.s32.totalorder %s60, %s62
      %p69 = scmp.eq.s32.totalorder %s17, 3
      %p70 = por %p68, %p69
      %p71 = scmp.ne.s32.totalorder %s62, %s63
      %p72 = scmp.eq.s32.totalorder %s17, 0
      %p73 = por %p71, %p72
      %p74 = scmp.ne.s32.totalorder %s62, %s63
      %p75 = scmp.eq.s32.totalorder %s18, 3
      %p76 = por %p74, %p75
      %p78 = scmp.ne.s32.totalorder %s63, %s77
      %p79 = scmp.eq.s32.totalorder %s18, 0
      %p80 = por %p78, %p79
      %s82 = sadd.s32 %s81, 1
      %p85 = scmp.eq.s32.totalorder %s12, 3
      %p86 = scmp.ne.s32.totalorder %s81, %s83
      %p87 = scmp.eq.s32.totalorder %s12, 0
      %p88 = por %p86, %p87
      %p89 = scmp.ne.s32.totalorder %s81, %s83
      %p90 = scmp.eq.s32.totalorder %s17, 3
      %p91 = por %p89, %p90
      %p92 = scmp.ne.s32.totalorder %s83, %s84
      %p93 = scmp.eq.s32.totalorder %s17, 0
      %p94 = por %p92, %p93
      %p95 = scmp.ne.s32.totalorder %s83, %s84
      %p96 = scmp.eq.s32.totalorder %s18, 3
      %p97 = por %p95, %p96
      %p99 = scmp.ne.s32.totalorder %s84, %s98
      %p100 = scmp.eq.s32.totalorder %s18, 0
      %p101 = por %p99, %p100
      %s102 = ssub.s32 %s19, %s31
      %p103 = scmp.eq.s32.totalorder %s102, 0
      %s105 = sadd.s32 %s104, 1
      %s106 = scalar_select %p103, %s104, %s105
      %p109 = pneg %p103
      %p110 = scmp.eq.s32.totalorder %s12, 3
      %p111 = por %p109, %p110
      %p112 = scmp.ne.s32.totalorder %s104, %s107
      %p113 = scmp.eq.s32.totalorder %s12, 0
      %p114 = por %p112, %p113
      %p115 = scmp.ne.s32.totalorder %s104, %s107
      %p116 = scmp.eq.s32.totalorder %s17, 3
      %p117 = por %p115, %p116
      %p118 = scmp.ne.s32.totalorder %s107, %s108
      %p119 = scmp.eq.s32.totalorder %s17, 0
      %p120 = por %p118, %p119
      %p121 = scmp.ne.s32.totalorder %s107, %s108
      %p122 = scmp.eq.s32.totalorder %s18, 3
      %p123 = por %p121, %p122
      %p125 = scmp.ne.s32.totalorder %s108, %s124
      %p126 = scmp.eq.s32.totalorder %s18, 0
      %p127 = por %p125, %p126
      %p128 = scmp.le.s32.totalorder 1, %s12
      %p129 = scmp.lt.s32.totalorder %s12, 5
      %p130 = pnand %p128, %p129
      %p131 = pneg %p130
      // Predicated region
      $region9: #{tpu_custom_call.1} parent=5 // pred_check
        _
      $region10: #{tpu_custom_call.1} parent=5 // pred_check_branch
        %133 = sbr.rel (%p130) target = $region12
      $region11: #{tpu_custom_call.1} parent=5 // pred_region
        %s134 = ssub.s32 %s12, 1
        // Predicated region
        $region13: #{tpu_custom_call.1} parent=11 // pred_check
          %p135 = pneg %p73
        $region14: #{tpu_custom_call.1} parent=11 // pred_check_branch
          %137 = sbr.rel (%p135) target = $region16
        $region15: #{tpu_custom_call.1} parent=11 // pred_region
          _
        $region16: #{tpu_custom_call.1} parent=11 // pred_fallthru
          _
        // Predicated region
        $region17: #{tpu_custom_call.1} parent=11 // pred_check
          %p138 = pneg %p94
        $region18: #{tpu_custom_call.1} parent=11 // pred_check_branch
          %140 = sbr.rel (%p138) target = $region20
        $region19: #{tpu_custom_call.1} parent=11 // pred_region
          _
        $region20: #{tpu_custom_call.1} parent=11 // pred_fallthru
          _
      $region12: #{tpu_custom_call.1} parent=5 // pred_fallthru
        _
      %p141 = scmp.lt.s32.totalorder %s12, 4
      // Predicated region
      $region21: #{tpu_custom_call.1} parent=5 // pred_check
        %p142 = pneg %p141
      $region22: #{tpu_custom_call.1} parent=5 // pred_check_branch
        %144 = sbr.rel (%p142) target = $region24
      $region23: #{tpu_custom_call.1} parent=5 // pred_region
        // Predicated region
        $region25: #{tpu_custom_call.1} parent=23 // pred_check
          %p145 = pneg %p46
        $region26: #{tpu_custom_call.1} parent=23 // pred_check_branch
          %147 = sbr.rel (%p145) target = $region28
        $region27: #{tpu_custom_call.1} parent=23 // pred_region
          %s148 = sand.u32 %s36, 1
          %s149 = scalar_lea.sflag [#allocation5], %s148
          %s150 = sand.u32 %s36, 1
          %s151 = smul.addr %s150, 32
          %s152 = scalar_lea.vmem [#allocation4], %s151
          %s154 = ssub.s32 512, 512
          %155 = vsyncadd %s149, %s154
          %s156 = smul.addr %s19, 8
          %s157 = sadd.s32 %s20, %s156
          %s158 = smul.addr %s157, 128
          %s159 = scalar_lea.hbm %s0, %s158
          %s160 = sshll.u32 %s152, 4
          %s161 = int_to_ptr.vmem [resolvable:$true] %s160
          %166 = dma.hbm_to_vmem [thread:$0]  %s159, 512, %s161, %s149, 256, 128, 8
        $region28: #{tpu_custom_call.1} parent=23 // pred_fallthru
          _
      $region24: #{tpu_custom_call.1} parent=5 // pred_fallthru
        _
      %p167 = scmp.le.s32.totalorder 1, %s12
      %p168 = scmp.lt.s32.totalorder %s12, 5
      %p169 = pnand %p167, %p168
      %p170 = pneg %p169
      // Predicated region
      $region29: #{tpu_custom_call.1} parent=5 // pred_check
        _
      $region30: #{tpu_custom_call.1} parent=5 // pred_check_branch
        %172 = sbr.rel (%p169) target = $region32
      $region31: #{tpu_custom_call.1} parent=5 // pred_region
        %s173 = ssub.s32 %s12, 1
        %s174 = sand.u32 %s39, 1
        %s175 = scalar_lea.sflag [#allocation5], %s174
        %s176 = sand.u32 %s39, 1
        %s177 = smul.addr %s176, 32
        %s178 = scalar_lea.vmem [#allocation4], %s177
        // Predicated region
        $region33: #{tpu_custom_call.1} parent=31 // pred_check
          %p179 = pneg %p52
        $region34: #{tpu_custom_call.1} parent=31 // pred_check_branch
          %181 = sbr.rel (%p179) target = $region36
        $region35: #{tpu_custom_call.1} parent=31 // pred_region
          %182 = dma.done %s175, 512
        $region36: #{tpu_custom_call.1} parent=31 // pred_fallthru
          _
        %s183 = sand.u32 %s39, 1
        %s184 = scalar_lea.sflag [#allocation5], %s183
        %s185 = sand.u32 %s39, 1
        %s186 = smul.addr %s185, 32
        %s187 = scalar_lea.vmem [#allocation4], %s186
        %p188 = pneg %p52
        %p189 = pneg %p49
        %p190 = pneg %p73
        %p191 = pneg %p70
        %p192 = pneg %p94
        %p193 = pneg %p91
        %p194 = pneg %p120
        %p195 = pneg %p117
        %p196 = scmp.lt.s32.totalorder %s21, 1
        %s197 = scalar_select %p196, %s21, 1
        %s198 = smul.addr %s197, 4
        %s199 = smul.addr %s198, 8
        %s200 = scalar_lea.vmem %s3, %s199
        %p201 = scmp.lt.s32.totalorder %s21, 1
        %s202 = scalar_select %p201, %s21, 1
        %s203 = smul.addr %s202, 4
        %s204 = smul.addr %s203, 8
        %s205 = scalar_lea.vmem %s3, %s204
        %p206 = scmp.eq.s32.totalorder %s22, 0
        // Predicated region
        $region37: #{tpu_custom_call.1} parent=31 // pred_check
          %p207 = pneg %p206
        $region38: #{tpu_custom_call.1} parent=31 // pred_check_branch
          %209 = sbr.rel (%p207) target = $region40
        $region39: #{tpu_custom_call.1} parent=31 // pred_region
          %210 = vst [vmem:[#allocation2] sm:$0xff] 0.0
          %211 = vst [vmem:[#allocation2 + $0x8] sm:$0xff] 0.0
          %212 = vst [vmem:[#allocation2 + $0x10] sm:$0xff] 0.0
          %213 = vst [vmem:[#allocation2 + $0x18] sm:$0xff] 0.0
          %214 = vst [vmem:[#allocation3] sm:$0xff] -inf
          %215 = vst [vmem:[#allocation3 + $0x8] sm:$0xff] -inf
          %216 = vst [vmem:[#allocation3 + $0x10] sm:$0xff] -inf
          %217 = vst [vmem:[#allocation3 + $0x18] sm:$0xff] -inf
        $region40: #{tpu_custom_call.1} parent=31 // pred_fallthru
          _
        %v218 = vld [vmem:[%s178] sm:$0xff]
        %v219 = vld [vmem:[%s178 + $0x8] sm:$0xff]
        %v220 = vld [vmem:[%s178 + $0x10] sm:$0xff]
        %v221 = vld [vmem:[%s178 + $0x18] sm:$0xff]
        %v222 = vld [vmem:[#allocation2] sm:$0xff]
        %v223 = vld [vmem:[#allocation2 + $0x8] sm:$0xff]
        %v224 = vld [vmem:[#allocation2 + $0x10] sm:$0xff]
        %v225 = vld [vmem:[#allocation2 + $0x18] sm:$0xff]
        %v226 = vadd.f32 %v222, %v218
        %v227 = vadd.f32 %v223, %v219
        %v228 = vadd.f32 %v224, %v220
        %v229 = vadd.f32 %v225, %v221
        %230 = vst [vmem:[#allocation2] sm:$0xff] %v226
        %231 = vst [vmem:[#allocation2 + $0x8] sm:$0xff] %v227
        %232 = vst [vmem:[#allocation2 + $0x10] sm:$0xff] %v228
        %233 = vst [vmem:[#allocation2 + $0x18] sm:$0xff] %v229
        %v234 = vld [vmem:[#allocation3] sm:$0xff]
        %v235 = vld [vmem:[#allocation3 + $0x8] sm:$0xff]
        %v236 = vld [vmem:[#allocation3 + $0x10] sm:$0xff]
        %v237 = vld [vmem:[#allocation3 + $0x18] sm:$0xff]
        %v238 = vmax.f32 %v234, %v218
        %v239 = vmax.f32 %v235, %v219
        %v240 = vmax.f32 %v236, %v220
        %v241 = vmax.f32 %v237, %v221
        %242 = vst [vmem:[#allocation3] sm:$0xff] %v238
        %243 = vst [vmem:[#allocation3 + $0x8] sm:$0xff] %v239
        %244 = vst [vmem:[#allocation3 + $0x10] sm:$0xff] %v240
        %245 = vst [vmem:[#allocation3 + $0x18] sm:$0xff] %v241
        %p246 = scmp.eq.s32.totalorder %s22, 1
        // Predicated region
        $region41: #{tpu_custom_call.1} parent=31 // pred_check
          %p247 = pneg %p246
        $region42: #{tpu_custom_call.1} parent=31 // pred_check_branch
          %249 = sbr.rel (%p247) target = $region44
        $region43: #{tpu_custom_call.1} parent=31 // pred_region
          %v250 = vld [vmem:[#allocation2] sm:$0xff]
          %v251 = vld [vmem:[#allocation2 + $0x8] sm:$0xff]
          %v252 = vld [vmem:[#allocation2 + $0x10] sm:$0xff]
          %v253 = vld [vmem:[#allocation2 + $0x18] sm:$0xff]
          %254 = vadd.xlane.f32.xlu0 %v250
          %v255 = vpop.xlane.xlu0 %254
          %256 = vadd.xlane.f32.xlu0 %v251
          %v257 = vpop.xlane.xlu0 %256
          %258 = vadd.xlane.f32.xlu0 %v252
          %v259 = vpop.xlane.xlu0 %258
          %260 = vadd.xlane.f32.xlu0 %v253
          %v261 = vpop.xlane.xlu0 %260
          %v262 = vmul.f32 %v255, 0.00390625
          %v263 = vmul.f32 %v257, 0.00390625
          %v264 = vmul.f32 %v259, 0.00390625
          %v265 = vmul.f32 %v261, 0.00390625
          %v266 = vld [vmem:[#allocation3] sm:$0xff]
          %v267 = vld [vmem:[#allocation3 + $0x8] sm:$0xff]
          %v268 = vld [vmem:[#allocation3 + $0x10] sm:$0xff]
          %v269 = vld [vmem:[#allocation3 + $0x18] sm:$0xff]
          %270 = vmax.xlane.f32.xlu0 %v266
          %v271 = vpop.xlane.xlu0 %270
          %272 = vmax.xlane.f32.xlu0 %v267
          %v273 = vpop.xlane.xlu0 %272
          %274 = vmax.xlane.f32.xlu0 %v268
          %v275 = vpop.xlane.xlu0 %274
          %276 = vmax.xlane.f32.xlu0 %v269
          %v277 = vpop.xlane.xlu0 %276
          %vm278 = vcmask 7168
          %v279 = vsel %vm278, %v262, %v271
          %v280 = vsel %vm278, %v263, %v273
          %v281 = vsel %vm278, %v264, %v275
          %v282 = vsel %vm278, %v265, %v277
          %v283 = vld [vmem:[%s1] sm:$0x3]
          %v284 = vld [vmem:[%s2] sm:$0xff]
          %v285 = vld [vmem:[%s2 + $0x8] sm:$0xff]
          %v286 = vld [vmem:[%s2 + $0x10] sm:$0xff]
          %v287 = vld [vmem:[%s2 + $0x18] sm:$0xff]
          %vm288 = vcmask 261120
          %v290 = vsel %vm288, %v283, 0
          %292 = vmatprep.subr.mxu0 0.0
          %293 = vmatpush1.msra.mxu0 0.0
          %294 = vmatprep.subr.mxu0 0.0
          %295 = vmatpush1.msra.mxu0 0.0
          %296 = vmatprep.subr.mxu0 0.0
          %297 = vmatpush1.msra.mxu0 0.0
          %298 = vmatprep.subr.mxu0 0.0
          %299 = vmatpush1.msra.mxu0 0.0
          %300 = vmatprep.subr.mxu0 0.0
          %301 = vmatpush1.msra.mxu0 0.0
          %302 = vmatprep.subr.mxu0 0.0
          %303 = vmatpush1.msra.mxu0 0.0
          %304 = vmatprep.subr.mxu0 0.0
          %305 = vmatpush1.msra.mxu0 0.0
          %306 = vmatprep.subr.mxu0 0.0
          %307 = vmatpush1.msra.mxu0 0.0
          %308 = vmatprep.subr.mxu0 0.0
          %309 = vmatpush1.msra.mxu0 0.0
          %310 = vmatprep.subr.mxu0 0.0
          %311 = vmatpush1.msra.mxu0 0.0
          %312 = vmatprep.subr.mxu0 0.0
          %313 = vmatpush1.msra.mxu0 0.0
          %314 = vmatprep.subr.mxu0 0.0
          %315 = vmatpush1.msra.mxu0 0.0
          %316 = vmatprep.subr.mxu0 0.0
          %317 = vmatpush1.msra.mxu0 %v282
          %318 = vmatprep.subr.mxu0 0.0
          %319 = vmatpush1.msra.mxu0 %v281
          %320 = vmatprep.subr.mxu0 0.0
          %321 = vmatpush1.msra.mxu0 %v280
          %322 = vmatprep.subr.mxu0 0.0
          %323 = vmatpush1.msra.mxu0 %v279
          %324 = vmatprep.subr.mxu0 0.0
          %325 = vmatpush2.msra.mxu0 0.0
          %326 = vmatprep.subr.mxu0 0.0
          %327 = vmatpush2.msra.mxu0 0.0
          %328 = vmatprep.subr.mxu0 0.0
          %329 = vmatpush2.msra.mxu0 0.0
          %330 = vmatprep.subr.mxu0 0.0
          %331 = vmatpush2.msra.mxu0 0.0
          %332 = vmatprep.subr.mxu0 0.0
          %333 = vmatpush2.msra.mxu0 0.0
          %334 = vmatprep.subr.mxu0 0.0
          %335 = vmatpush2.msra.mxu0 0.0
          %336 = vmatprep.subr.mxu0 0.0
          %337 = vmatpush2.msra.mxu0 0.0
          %338 = vmatprep.subr.mxu0 0.0
          %339 = vmatpush2.msra.mxu0 0.0
          %340 = vmatprep.subr.mxu0 0.0
          %341 = vmatpush2.msra.mxu0 0.0
          %342 = vmatprep.subr.mxu0 0.0
          %343 = vmatpush2.msra.mxu0 0.0
          %344 = vmatprep.subr.mxu0 0.0
          %345 = vmatpush2.msra.mxu0 0.0
          %346 = vmatprep.subr.mxu0 0.0
          %347 = vmatpush2.msra.mxu0 0.0
          %348 = vmatprep.subr.mxu0 0.0
          %349 = vmatpush2.msra.mxu0 0.0
          %350 = vmatprep.subr.mxu0 0.0
          %351 = vmatpush2.msra.mxu0 0.0
          %352 = vmatprep.subr.mxu0 0.0
          %353 = vmatpush2.msra.mxu0 0.0
          %354 = vmatprep.subr.mxu0 0.0
          %355 = vmatpush2.msra.mxu0 0.0
          %356 = vmatprep.mubr.f32.mxu0 0.0
          %357 = vmatmul.mubr.f32.gmra.mxu0 %v290
          %v358 = vpop.f32.mrf.mxu0
          %v359 = vadd.f32 0.0, %v358
          %v360 = vpop.f32.mrf.mxu0
          %361 = vdwg.mxu0
          %v362 = vmax.f32 %v359, 0.0
          %vm363 = vcmask 15360
          %v365 = vsel %vm363, %v284, 0
          %v368 = vsel %vm363, %v285, 0
          %v371 = vsel %vm363, %v286, 0
          %v374 = vsel %vm363, %v287, 0
          %vm376 = vcmask 1041408
          %v378 = vsel %vm376, %v362, 0
          %380 = vmatprep.subr.mxu0 0.0
          %381 = vmatpush1.msra.mxu0 0.0
          %382 = vmatprep.subr.mxu0 0.0
          %383 = vmatpush1.msra.mxu0 0.0
          %384 = vmatprep.subr.mxu0 0.0
          %385 = vmatpush1.msra.mxu0 0.0
          %386 = vmatprep.subr.mxu0 0.0
          %387 = vmatpush1.msra.mxu0 0.0
          %388 = vmatprep.subr.mxu0 0.0
          %389 = vmatpush1.msra.mxu0 0.0
          %390 = vmatprep.subr.mxu0 0.0
          %391 = vmatpush1.msra.mxu0 0.0
          %392 = vmatprep.subr.mxu0 0.0
          %393 = vmatpush1.msra.mxu0 0.0
          %394 = vmatprep.subr.mxu0 0.0
          %395 = vmatpush1.msra.mxu0 0.0
          %396 = vmatprep.subr.mxu0 0.0
          %397 = vmatpush1.msra.mxu0 0.0
          %398 = vmatprep.subr.mxu0 0.0
          %399 = vmatpush1.msra.mxu0 0.0
          %400 = vmatprep.subr.mxu0 0.0
          %401 = vmatpush1.msra.mxu0 0.0
          %402 = vmatprep.subr.mxu0 0.0
          %403 = vmatpush1.msra.mxu0 0.0
          %404 = vmatprep.subr.mxu0 0.0
          %405 = vmatpush1.msra.mxu0 0.0
          %406 = vmatprep.subr.mxu0 0.0
          %407 = vmatpush1.msra.mxu0 0.0
          %408 = vmatprep.subr.mxu0 0.0
          %409 = vmatpush1.msra.mxu0 0.0
          %410 = vmatprep.subr.mxu0 0.0
          %411 = vmatpush1.msra.mxu0 %v378
          %412 = vmatprep.subr.mxu0 0.0
          %413 = vmatpush2.msra.mxu0 0.0
          %414 = vmatprep.subr.mxu0 0.0
          %415 = vmatpush2.msra.mxu0 0.0
          %416 = vmatprep.subr.mxu0 0.0
          %417 = vmatpush2.msra.mxu0 0.0
          %418 = vmatprep.subr.mxu0 0.0
          %419 = vmatpush2.msra.mxu0 0.0
          %420 = vmatprep.subr.mxu0 0.0
          %421 = vmatpush2.msra.mxu0 0.0
          %422 = vmatprep.subr.mxu0 0.0
          %423 = vmatpush2.msra.mxu0 0.0
          %424 = vmatprep.subr.mxu0 0.0
          %425 = vmatpush2.msra.mxu0 0.0
          %426 = vmatprep.subr.mxu0 0.0
          %427 = vmatpush2.msra.mxu0 0.0
          %428 = vmatprep.subr.mxu0 0.0
          %429 = vmatpush2.msra.mxu0 0.0
          %430 = vmatprep.subr.mxu0 0.0
          %431 = vmatpush2.msra.mxu0 0.0
          %432 = vmatprep.subr.mxu0 0.0
          %433 = vmatpush2.msra.mxu0 0.0
          %434 = vmatprep.subr.mxu0 0.0
          %435 = vmatpush2.msra.mxu0 0.0
          %436 = vmatprep.subr.mxu0 0.0
          %437 = vmatpush2.msra.mxu0 0.0
          %438 = vmatprep.subr.mxu0 0.0
          %439 = vmatpush2.msra.mxu0 0.0
          %440 = vmatprep.subr.mxu0 0.0
          %441 = vmatpush2.msra.mxu0 0.0
          %442 = vmatprep.subr.mxu0 0.0
          %443 = vmatpush2.msra.mxu0 0.0
          %444 = vmatprep.mubr.f32.mxu0 0.0
          %445 = vmatmul.mubr.f32.gmra.mxu0 %v365
          %v446 = vpop.f32.mrf.mxu0
          %v447 = vadd.f32 0.0, %v446
          %v448 = vpop.f32.mrf.mxu0
          %449 = vmatprep.mubr.f32.mxu0 0.0
          %450 = vmatmul.mubr.f32.gmra.mxu0 %v368
          %v451 = vpop.f32.mrf.mxu0
          %v452 = vadd.f32 0.0, %v451
          %v453 = vpop.f32.mrf.mxu0
          %454 = vmatprep.mubr.f32.mxu0 0.0
          %455 = vmatmul.mubr.f32.gmra.mxu0 %v371
          %v456 = vpop.f32.mrf.mxu0
          %v457 = vadd.f32 0.0, %v456
          %v458 = vpop.f32.mrf.mxu0
          %459 = vmatprep.mubr.f32.mxu0 0.0
          %460 = vmatmul.mubr.f32.gmra.mxu0 %v374
          %v461 = vpop.f32.mrf.mxu0
          %v462 = vadd.f32 0.0, %v461
          %v463 = vpop.f32.mrf.mxu0
          %464 = vdwg.mxu0
          %v465 = vsel %vm363, %v447, 0.0
          %466 = vadd.xlane.f32.xlu0 %v465
          %v467 = vpop.xlane.xlu0 %466
          %v468 = vsel %vm363, %v452, 0.0
          %469 = vadd.xlane.f32.xlu0 %v468
          %v470 = vpop.xlane.xlu0 %469
          %v471 = vsel %vm363, %v457, 0.0
          %472 = vadd.xlane.f32.xlu0 %v471
          %v473 = vpop.xlane.xlu0 %472
          %v474 = vsel %vm363, %v462, 0.0
          %475 = vadd.xlane.f32.xlu0 %v474
          %v476 = vpop.xlane.xlu0 %475
          %v477 = vxor.u32 %v467, 2147483648
          %v478 = vxor.u32 %v470, 2147483648
          %v479 = vxor.u32 %v473, 2147483648
          %v480 = vxor.u32 %v476, 2147483648
          %v481 = vmul.f32 %v477, 1.442695
          %v482 = vpow.pop %v481
          %v483 = vmul.f32 %v478, 1.442695
          %v484 = vpow.pop %v483
          %v485 = vmul.f32 %v479, 1.442695
          %v486 = vpow.pop %v485
          %v487 = vmul.f32 %v480, 1.442695
          %v488 = vpow.pop %v487
          %v489 = vadd.f32 %v482, 1.0
          %v490 = vadd.f32 %v484, 1.0
          %v491 = vadd.f32 %v486, 1.0
          %v492 = vadd.f32 %v488, 1.0
          %v493 = vrcp.pop %v489
          %v494 = vmul.f32 1.0, %v493
          %v495 = vrcp.pop %v490
          %v496 = vmul.f32 1.0, %v495
          %v497 = vrcp.pop %v491
          %v498 = vmul.f32 1.0, %v497
          %v499 = vrcp.pop %v492
          %v500 = vmul.f32 1.0, %v499
          %501 = vst.msk [vmem:[%s205] sm:$0xff] %vm278, %v494
          %502 = vst.msk [vmem:[%s205 + $0x8] sm:$0xff] %vm278, %v496
          %503 = vst.msk [vmem:[%s205 + $0x10] sm:$0xff] %vm278, %v498
          %504 = vst.msk [vmem:[%s205 + $0x18] sm:$0xff] %vm278, %v500
        $region44: #{tpu_custom_call.1} parent=31 // pred_fallthru
          _
        %p505 = scmp.lt.s32.totalorder %s21, 1
        %s506 = scalar_select %p505, %s21, 1
        %s507 = smul.addr %s506, 4
        %s508 = smul.addr %s507, 8
        %s509 = scalar_lea.vmem %s3, %s508
        // Predicated region
        $region45: #{tpu_custom_call.1} parent=31 // pred_check
          %p510 = pneg %p117
        $region46: #{tpu_custom_call.1} parent=31 // pred_check_branch
          %512 = sbr.rel (%p510) target = $region48
        $region47: #{tpu_custom_call.1} parent=31 // pred_region
          _
        $region48: #{tpu_custom_call.1} parent=31 // pred_fallthru
          _
      $region32: #{tpu_custom_call.1} parent=5 // pred_fallthru
        _
      %p513 = scmp.le.s32.totalorder 2, %s12
      // Predicated region
      $region49: #{tpu_custom_call.1} parent=5 // pred_check
        %p514 = pneg %p513
      $region50: #{tpu_custom_call.1} parent=5 // pred_check_branch
        %516 = sbr.rel (%p514) target = $region52
      $region51: #{tpu_custom_call.1} parent=5 // pred_region
        %s517 = ssub.s32 %s12, 2
        // Predicated region
        $region53: #{tpu_custom_call.1} parent=51 // pred_check
          %p518 = pneg %p123
        $region54: #{tpu_custom_call.1} parent=51 // pred_check_branch
          %520 = sbr.rel (%p518) target = $region56
        $region55: #{tpu_custom_call.1} parent=51 // pred_region
          %p521 = scmp.lt.s32.totalorder %s23, 1
          %s522 = scalar_select %p521, %s23, 1
          %s523 = smul.addr %s522, 4
          %s524 = smul.addr %s523, 8
          %s525 = scalar_lea.vmem %s3, %s524
        $region56: #{tpu_custom_call.1} parent=51 // pred_fallthru
          _
      $region52: #{tpu_custom_call.1} parent=5 // pred_fallthru
        _
    $region6: #{tpu_custom_call.1} parent=1 // loop_footer
      %s16 = sadd.s32 1, %s12
    $region7: #{tpu_custom_call.1} parent=1 // loop_footer_branch
      %11 = sbr.rel target = $region3
    $region8: #{tpu_custom_call.1} parent=1 // loop_exit
      _
    %526 = vsyncpa [#allocation5], 1
    %s527 = scalar_lea.sflag [#allocation5], 1
    %528 = vsyncpa %s527, 1

</llo_original>
